<compile_context>
chip_gen: v5e
topology: v5e:2x2
jax: 0.10.0
libtpu: 0.0.40
codegen_flags: <defaults>
</compile_context>

<pallas_src>
import functools

import jax
import jax.numpy as jnp
from jax.experimental import pallas as pl
from jax.experimental.pallas import tpu as pltpu


def _dc_srec_ce_kernel(logits_ref, tgt_ref, skel_ref, stats_ref, ce_ref, *,
                       tile_n, hw, n_blk, blk_per_shard,
                       needs_mask, needs_step_guard):
    """Per-tile work for one (C, tile_n) pixel block of one batch element.

    logits_ref : (C, tile_n) logits (native dtype, upcast to f32 in-kernel)
    tgt_ref    : (1, tile_n) integer class label per pixel (dice / CE target)
    skel_ref   : (1, tile_n) integer class label per pixel (skeleton target)
    stats_ref  : (5, C, fold_w) f32 lane-partial accumulators, rows =
                 [sum_p, intersect_dice, sum_gt_dice, intersect_skel, sum_gt_skel]
    ce_ref     : (1, fold_w)   f32 lane-partial sum of per-pixel cross-entropy
    """
    c = pl.program_id(0)   # core shard ("parallel": split across TensorCores)
    b = pl.program_id(1)   # batch element
    i = pl.program_id(2)   # pixel block within this shard

    fold_w = stats_ref.shape[-1]

    @pl.when((b == 0) & (i == 0))
    def _init():
        stats_ref[...] = jnp.zeros_like(stats_ref)
        ce_ref[...] = jnp.zeros_like(ce_ref)

    global_blk = c * blk_per_shard + i   # block index over the whole image

    def lane_fold(q):
        # Tree-reduce tile_n lanes down to fold_w lane-partial sums (pure VPU
        # vreg-column adds: no cross-lane XLU reduction, no masked (C,1) stores,
        # no serial add chain).  Final lane reduction happens in the wrapper.
        parts = [q[:, j * fold_w:(j + 1) * fold_w]
                 for j in range(q.shape[-1] // fold_w)]
        while len(parts) > 1:
            nxt = [parts[k] + parts[k + 1] for k in range(0, len(parts) - 1, 2)]
            if len(parts) % 2:
                nxt.append(parts[-1])
            parts = nxt
        return parts[0]

    def accumulate(lane_valid):
        logits = logits_ref[...].astype(jnp.float32)     # (C, TN)
        tgt = tgt_ref[...].astype(jnp.int32)             # (1, TN) native-dtype labels
        skl = skel_ref[...].astype(jnp.int32)            # (1, TN)

        if lane_valid is not None:
            # Tail tile only: lanes >= hw are DMA padding -> sanitize/mask out.
            logits = jnp.where(lane_valid, logits, 0.0)
            tgt = jnp.where(lane_valid, tgt, -1)
            skl = jnp.where(lane_valid, skl, -1)

        # numerically-stable softmax over the channel (sublane) axis
        m = jnp.max(logits, axis=0, keepdims=True)       # (1, TN)
        e = jnp.exp(logits - m)                          # (C, TN)  EUP
        s = jnp.sum(e, axis=0, keepdims=True)            # (1, TN)
        r = pl.reciprocal(s, approx=True)                # EUP vrcp (idle slot)
        r = r * (2.0 - s * r)                            # one Newton step -> ~f32 exact
        p = e * r                                        # softmax probabilities

        # predicated selects instead of float one-hot multiplies
        class_ids = jax.lax.broadcasted_iota(jnp.int32, logits.shape, 0)
        m_d = class_ids == tgt                           # (C, TN) dice / CE target mask
        m_s = class_ids == skl                           # (C, TN) skeleton target mask

        # per-pixel cross entropy: logsumexp(logits) - logit[target]
        logit_t = jnp.sum(jnp.where(m_d, logits, 0.0), axis=0, keepdims=True)
        ce_pix = (m + jnp.log(s)) - logit_t              # (1, TN)

        p_sum = p
        if lane_valid is not None:
            p_sum = jnp.where(lane_valid, p, 0.0)
            ce_pix = jnp.where(lane_valid, ce_pix, 0.0)

        stats_ref[0] += lane_fold(p_sum)                      # sum softmax  (dice denom)
        stats_ref[1] += lane_fold(jnp.where(m_d, p, 0.0))     # intersect    (dice)
        stats_ref[2] += lane_fold(jnp.where(m_d, 1.0, 0.0))   # gt count     (dice denom)
        stats_ref[3] += lane_fold(jnp.where(m_s, p, 0.0))     # intersect    (skel recall)
        stats_ref[4] += lane_fold(jnp.where(m_s, 1.0, 0.0))   # gt count     (recall denom)
        ce_ref[...] += lane_fold(ce_pix)                      # summed cross-entropy

    if needs_mask:
        # Only the very last pixel block of the image is partial; every other
        # block takes the mask-free path (no per-lane where / validity math).
        @pl.when(global_blk < n_blk - 1)
        def _clean():
            accumulate(None)

        @pl.when(global_blk == n_blk - 1)
        def _tail():
            lane = jax.lax.broadcasted_iota(jnp.int32, (1, tile_n), 1)
            accumulate(((n_blk - 1) * tile_n + lane) < hw)
    elif needs_step_guard:
        # Padded steps of the core split (global_blk >= n_blk) contribute nothing.
        @pl.when(global_blk < n_blk)
        def _guarded():
            accumulate(None)
    else:
        accumulate(None)


@functools.partial(jax.jit, static_argnames=("tile_n",))
def dc_skelrec_and_ce_loss(
    net_output,            # (B, C, H, W) float logits (f32 or bf16)
    target,                # (B, 1, H, W) integer class labels (any int dtype)
    skel,                  # (B, 1, H, W) integer skeleton labels (any int dtype)
    *,
    weight_ce=1.0,
    weight_dice=1.0,
    weight_srec=1.0,
    smooth_dice=1e-5,
    smooth_srec=1e-5,
    tile_n=8192,           # pixels per tile; big tiles amortize per-step overhead
):
    B, C, H, W = net_output.shape
    HW = H * W

    # Free reshapes only — no transpose and no dtype cast before the kernel
    # (labels keep their native dtype; one streaming read of the logits).
    logits = net_output.reshape(B, C, HW)
    tgt = target.reshape(B, 1, HW)
    skl = skel.reshape(B, 1, HW)

    hw_ceil = ((HW + 127) // 128) * 128
    tn = max(128, (min(int(tile_n), hw_ceil, 32768) // 128) * 128)
    n_blk = pl.cdiv(HW, tn)
    needs_mask = (n_blk * tn != HW)          # only the final block is partial

    # Leading "parallel" grid axis: splits pixel blocks across the two
    # TensorCores on multi-core chips (v7x); on single-core chips it simply
    # serializes, with each shard owning its own accumulator slab.
    num_shards = 2 if n_blk >= 2 else 1
    blk_per_shard = pl.cdiv(n_blk, num_shards)
    needs_step_guard = (num_shards * blk_per_shard != n_blk)

    # Lane-partial accumulator width: >=512 lanes when possible so the in-kernel
    # fold only collapses tn/fold_w chunks (4x fewer VPU adds than folding
    # straight to 128) while stores stay lane-dense (multiple of 128).
    if tn % 512 == 0:
        fold_w = 512
    elif tn % 256 == 0:
        fold_w = 256
    else:
        fold_w = 128

    def _blk(c, b, i):
        blk = c * blk_per_shard + i
        if needs_step_guard:
            blk = jnp.minimum(blk, n_blk - 1)   # padded steps re-read last block
        return blk

    kernel = functools.partial(
        _dc_srec_ce_kernel, tile_n=tn, hw=HW, n_blk=n_blk,
        blk_per_shard=blk_per_shard, needs_mask=needs_mask,
        needs_step_guard=needs_step_guard)

    stats, ce_part = pl.pallas_call(
        kernel,
        out_shape=(
            jax.ShapeDtypeStruct((num_shards, 5, C, fold_w), jnp.float32),
            jax.ShapeDtypeStruct((num_shards, 1, fold_w), jnp.float32),
        ),
        grid_spec=pltpu.PrefetchScalarGridSpec(
            num_scalar_prefetch=0,
            grid=(num_shards, B, blk_per_shard),
            in_specs=[
                pl.BlockSpec((None, C, tn), lambda c, b, i: (b, 0, _blk(c, b, i))),
                pl.BlockSpec((None, 1, tn), lambda c, b, i: (b, 0, _blk(c, b, i))),
                pl.BlockSpec((None, 1, tn), lambda c, b, i: (b, 0, _blk(c, b, i))),
            ],
            out_specs=[
                pl.BlockSpec((None, 5, C, fold_w), lambda c, b, i: (c, 0, 0, 0)),
                pl.BlockSpec((None, 1, fold_w), lambda c, b, i: (c, 0, 0)),
            ],
        ),
        compiler_params=pltpu.CompilerParams(
            # Accumulators carried across the (batch, block) axes; the shard
            # axis is independent and may run on separate TensorCores.
            dimension_semantics=("parallel", "arbitrary", "arbitrary"),
            vmem_limit_bytes=48 * 1024 * 1024,
        ),
    )(logits, tgt, skl)

    # Tiny final reductions (shards, lanes, then classes) in plain JAX.
    stats = jnp.sum(stats, axis=(0, -1))                 # (5, C)
    sum_p, inter_d, gt_d, inter_s, gt_s = stats

    # RobustCrossEntropyLoss: mean CE over all pixels
    ce_loss = jnp.sum(ce_part) / (B * HW)

    # MemoryEfficientSoftDiceLoss (batch_dice=True, do_bg=False)
    dc = (2.0 * inter_d + smooth_dice) / jnp.maximum(sum_p + gt_d + smooth_dice, 1e-8)
    dc_loss = -jnp.mean(dc[1:])

    # SoftSkeletonRecallLoss (foreground classes only, batch_dice=True)
    rec = (inter_s + smooth_srec) / jnp.maximum(gt_s + smooth_srec, 1e-8)
    srec_loss = 1.0 - jnp.mean(rec[1:])

    # TODO(synk): ignore_label / loss_mask and batch_dice=False (per-sample
    # dice) paths are not implemented; this matches the default trainer config
    # (ignore_label=None, batch_dice=True), and ddp AllGather is single-device.
    return weight_ce * ce_loss + weight_dice * dc_loss + weight_srec * srec_loss


def _reference_loss(net_output, target, skel, weight_ce=1.0, weight_dice=1.0,
                    weight_srec=1.0, smooth_dice=1e-5, smooth_srec=1e-5):
    """Pure-JAX reference mirroring the PyTorch module semantics."""
    B, C, H, W = net_output.shape
    logp = jax.nn.log_softmax(net_output.astype(jnp.float32), axis=1)
    p = jnp.exp(logp)
    tgt = target[:, 0].astype(jnp.int32)
    skl = skel[:, 0].astype(jnp.int32)
    oh_d = jax.nn.one_hot(tgt, C, axis=1, dtype=jnp.float32)
    oh_s = jax.nn.one_hot(skl, C, axis=1, dtype=jnp.float32)

    ce_loss = jnp.mean(-jnp.sum(oh_d * logp, axis=1))

    axes = (0, 2, 3)                                    # batch_dice=True
    inter_d = jnp.sum(p * oh_d, axis=axes)
    sum_p = jnp.sum(p, axis=axes)
    gt_d = jnp.sum(oh_d, axis=axes)
    dc = (2.0 * inter_d + smooth_dice) / jnp.maximum(sum_p + gt_d + smooth_dice, 1e-8)
    dc_loss = -jnp.mean(dc[1:])

    inter_s = jnp.sum(p * oh_s, axis=axes)
    gt_s = jnp.sum(oh_s, axis=axes)
    rec = (inter_s + smooth_srec) / jnp.maximum(gt_s + smooth_srec, 1e-8)
    srec_loss = 1.0 - jnp.mean(rec[1:])

    return weight_ce * ce_loss + weight_dice * dc_loss + weight_srec * srec_loss


if __name__ == "__main__":
    key = jax.random.PRNGKey(0)
    k1, k2, k3, k4, k5, k6, k7, k8 = jax.random.split(key, 8)

    # 1) basic case: single clean tile, no masking.
    B, C, H, W = 2, 4, 16, 16
    net_output = jax.random.normal(k1, (B, C, H, W), dtype=jnp.float32)
    target = jax.random.randint(k2, (B, 1, H, W), 0, C, dtype=jnp.int32)
    # sparse skeleton: foreground class labels on ~30% of pixels, 0 elsewhere
    skel_lbl = jax.random.randint(k3, (B, 1, H, W), 1, C, dtype=jnp.int32)
    skel = jnp.where(jax.random.bernoulli(k4, 0.3, (B, 1, H, W)), skel_lbl, 0)

    loss = jax.block_until_ready(dc_skelrec_and_ce_loss(net_output, target, skel))
    ref = _reference_loss(net_output, target, skel)
    assert jnp.allclose(loss, ref, rtol=1e-4, atol=1e-4), (loss, ref)

    # 2) non-multiple-of-128 spatial size exercises the masked tail-tile path.
    H2 = W2 = 10
    net2 = jax.random.normal(k5, (B, C, H2, W2), dtype=jnp.float32)
    tgt2 = jax.random.randint(k6, (B, 1, H2, W2), 0, C, dtype=jnp.int32)
    skel2 = jnp.where(tgt2 > 1, tgt2, 0)
    loss2 = jax.block_until_ready(dc_skelrec_and_ce_loss(net2, tgt2, skel2))
    ref2 = _reference_loss(net2, tgt2, skel2)
    assert jnp.allclose(loss2, ref2, rtol=1e-4, atol=1e-4), (loss2, ref2)

    # 3) multiple tiles: 2-shard (dual-TensorCore) split, padded shard, tree
    #    lane fold and masked tail tile all exercised at once.
    H3 = W3 = 48
    net3 = jax.random.normal(k7, (B, C, H3, W3), dtype=jnp.float32)
    tgt3 = jax.random.randint(k8, (B, 1, H3, W3), 0, C, dtype=jnp.int32)
    skel3 = jnp.where(tgt3 > 1, tgt3, 0)
    loss3 = jax.block_until_ready(
        dc_skelrec_and_ce_loss(net3, tgt3, skel3, tile_n=1024))
    ref3 = _reference_loss(net3, tgt3, skel3)
    assert jnp.allclose(loss3, ref3, rtol=1e-4, atol=1e-4), (loss3, ref3)

    print("KERNEL_OK")
</pallas_src>

<mosaic_0001>
module attributes {stable_mosaic.version = 11 : i64} {
  func.func @_dc_srec_ce_kernel(%arg0: i32, %arg1: i32, %arg2: i32, %arg3: memref<1x4x256xf32, #tpu.memory_space<vmem>>, %arg4: memref<1x1x256xi32, #tpu.memory_space<vmem>>, %arg5: memref<1x1x256xi32, #tpu.memory_space<vmem>>, %arg6: memref<1x5x4x256xf32, #tpu.memory_space<vmem>>, %arg7: memref<1x1x256xf32, #tpu.memory_space<vmem>>) attributes {dimension_semantics = [#tpu.dimension_semantics<parallel>, #tpu.dimension_semantics<arbitrary>, #tpu.dimension_semantics<arbitrary>], iteration_bounds = array<i64: 1, 2, 1>, scalar_prefetch = 0 : i64, scratch_operands = 0 : i64, tpu.core_type = #tpu.core_type<tc>, window_params = [{transform_indices = @transform_0, window_bounds = array<i64: 1, 4, 256>}, {transform_indices = @transform_1, window_bounds = array<i64: 1, 1, 256>}, {transform_indices = @transform_2, window_bounds = array<i64: 1, 1, 256>}, {transform_indices = @transform_3, window_bounds = array<i64: 1, 5, 4, 256>}, {transform_indices = @transform_4, window_bounds = array<i64: 1, 1, 256>}]} {
    %c0_i32 = arith.constant 0 : i32
    %0 = arith.cmpi eq, %arg1, %c0_i32 : i32
    %c0_i32_0 = arith.constant 0 : i32
    %1 = arith.cmpi eq, %arg2, %c0_i32_0 : i32
    %2 = arith.andi %0, %1 : i1
    %3 = arith.extui %2 : i1 to i32
    %c0_i32_1 = arith.constant 0 : i32
    %4 = arith.cmpi ne, %3, %c0_i32_1 : i32
    scf.if %4 {
      %cst_62 = arith.constant 0.000000e+00 : f32
      %83 = vector.broadcast %cst_62 : f32 to vector<5x4x256xf32>
      %c0_63 = arith.constant 0 : index
      %c0_64 = arith.constant 0 : index
      %c0_65 = arith.constant 0 : index
      %c0_66 = arith.constant 0 : index
      %84 = vector.load %arg6[%c0_63, %c0_64, %c0_65, %c0_66] : memref<1x5x4x256xf32, #tpu.memory_space<vmem>>, vector<1x5x4x256xf32>
      %85 = vector.shape_cast %84 : vector<1x5x4x256xf32> to vector<5x4x256xf32>
      %86 = vector.shape_cast %83 : vector<5x4x256xf32> to vector<1x5x4x256xf32>
      tpu.vector_store %arg6[%c0_63, %c0_64, %c0_65, %c0_66], %86 {strides = array<i32>} : memref<1x5x4x256xf32, #tpu.memory_space<vmem>>, vector<1x5x4x256xf32>,
      %cst_67 = arith.constant 0.000000e+00 : f32
      %87 = vector.broadcast %cst_67 : f32 to vector<1x256xf32>
      %c0_68 = arith.constant 0 : index
      %c0_69 = arith.constant 0 : index
      %c0_70 = arith.constant 0 : index
      %88 = vector.load %arg7[%c0_68, %c0_69, %c0_70] : memref<1x1x256xf32, #tpu.memory_space<vmem>>, vector<1x1x256xf32>
      %89 = vector.shape_cast %88 : vector<1x1x256xf32> to vector<1x256xf32>
      %90 = vector.shape_cast %87 : vector<1x256xf32> to vector<1x1x256xf32>
      tpu.vector_store %arg7[%c0_68, %c0_69, %c0_70], %90 {strides = array<i32>} : memref<1x1x256xf32, #tpu.memory_space<vmem>>, vector<1x1x256xf32>,
    } else {
    }
    %c0 = arith.constant 0 : index
    %c0_2 = arith.constant 0 : index
    %c0_3 = arith.constant 0 : index
    %5 = vector.load %arg3[%c0, %c0_2, %c0_3] : memref<1x4x256xf32, #tpu.memory_space<vmem>>, vector<1x4x256xf32>
    %6 = vector.shape_cast %5 : vector<1x4x256xf32> to vector<4x256xf32>
    %c0_4 = arith.constant 0 : index
    %c0_5 = arith.constant 0 : index
    %c0_6 = arith.constant 0 : index
    %7 = vector.load %arg4[%c0_4, %c0_5, %c0_6] : memref<1x1x256xi32, #tpu.memory_space<vmem>>, vector<1x1x256xi32>
    %8 = vector.shape_cast %7 : vector<1x1x256xi32> to vector<1x256xi32>
    %c0_7 = arith.constant 0 : index
    %c0_8 = arith.constant 0 : index
    %c0_9 = arith.constant 0 : index
    %9 = vector.load %arg5[%c0_7, %c0_8, %c0_9] : memref<1x1x256xi32, #tpu.memory_space<vmem>>, vector<1x1x256xi32>
    %10 = vector.shape_cast %9 : vector<1x1x256xi32> to vector<1x256xi32>
    %cst = arith.constant dense<0xFF800000> : vector<256xf32>
    %11 = vector.multi_reduction <maximumf>, %6, %cst [0] : vector<4x256xf32> to vector<256xf32>
    %12 = vector.shape_cast %11 : vector<256xf32> to vector<1x256xf32>
    %13 = vector.broadcast %12 : vector<1x256xf32> to vector<4x256xf32>
    %14 = arith.subf %6, %13 : vector<4x256xf32>
    %15 = math.exp %14 : vector<4x256xf32>
    %cst_10 = arith.constant dense<0.000000e+00> : vector<256xf32>
    %16 = vector.multi_reduction <add>, %15, %cst_10 [0] : vector<4x256xf32> to vector<256xf32>
    %17 = vector.shape_cast %16 : vector<256xf32> to vector<1x256xf32>
    %18 = tpu.reciprocal %17 {approx = true} : vector<1x256xf32> -> vector<1x256xf32>
    %19 = arith.mulf %17, %18 : vector<1x256xf32>
    %cst_11 = arith.constant 2.000000e+00 : f32
    %20 = vector.broadcast %cst_11 : f32 to vector<1x256xf32>
    %21 = arith.subf %20, %19 : vector<1x256xf32>
    %22 = arith.mulf %18, %21 : vector<1x256xf32>
    %23 = vector.broadcast %22 : vector<1x256xf32> to vector<4x256xf32>
    %24 = arith.mulf %15, %23 : vector<4x256xf32>
    %25 = tpu.iota {dimensions = array<i32: 0>} : vector<4x256xi32>
    %26 = vector.broadcast %8 : vector<1x256xi32> to vector<4x256xi32>
    %27 = arith.cmpi eq, %25, %26 : vector<4x256xi32>
    %28 = vector.broadcast %10 : vector<1x256xi32> to vector<4x256xi32>
    %29 = arith.cmpi eq, %25, %28 : vector<4x256xi32>
    %cst_12 = arith.constant 0.000000e+00 : f32
    %30 = vector.broadcast %cst_12 : f32 to vector<4x256xf32>
    %31 = arith.select %27, %6, %30 : vector<4x256xi1>, vector<4x256xf32>
    %cst_13 = arith.constant dense<0.000000e+00> : vector<256xf32>
    %32 = vector.multi_reduction <add>, %31, %cst_13 [0] : vector<4x256xf32> to vector<256xf32>
    %33 = vector.shape_cast %32 : vector<256xf32> to vector<1x256xf32>
    %34 = math.log %17 : vector<1x256xf32>
    %35 = arith.addf %12, %34 : vector<1x256xf32>
    %36 = arith.subf %35, %33 : vector<1x256xf32>
    %c0_14 = arith.constant 0 : index
    %c0_15 = arith.constant 0 : index
    %c0_16 = arith.constant 0 : index
    %c0_17 = arith.constant 0 : index
    %37 = vector.load %arg6[%c0_14, %c0_15, %c0_16, %c0_17] : memref<1x5x4x256xf32, #tpu.memory_space<vmem>>, vector<1x1x4x256xf32>
    %38 = vector.shape_cast %37 : vector<1x1x4x256xf32> to vector<4x256xf32>
    %39 = arith.addf %38, %24 : vector<4x256xf32>
    %c0_18 = arith.constant 0 : index
    %c0_19 = arith.constant 0 : index
    %c0_20 = arith.constant 0 : index
    %c0_21 = arith.constant 0 : index
    %40 = vector.load %arg6[%c0_18, %c0_19, %c0_20, %c0_21] : memref<1x5x4x256xf32, #tpu.memory_space<vmem>>, vector<1x1x4x256xf32>
    %41 = vector.shape_cast %40 : vector<1x1x4x256xf32> to vector<4x256xf32>
    %42 = vector.shape_cast %39 : vector<4x256xf32> to vector<1x1x4x256xf32>
    tpu.vector_store %arg6[%c0_18, %c0_19, %c0_20, %c0_21], %42 {strides = array<i32>} : memref<1x5x4x256xf32, #tpu.memory_space<vmem>>, vector<1x1x4x256xf32>,
    %c0_22 = arith.constant 0 : index
    %c1 = arith.constant 1 : index
    %c0_23 = arith.constant 0 : index
    %c0_24 = arith.constant 0 : index
    %43 = vector.load %arg6[%c0_22, %c1, %c0_23, %c0_24] : memref<1x5x4x256xf32, #tpu.memory_space<vmem>>, vector<1x1x4x256xf32>
    %44 = vector.shape_cast %43 : vector<1x1x4x256xf32> to vector<4x256xf32>
    %cst_25 = arith.constant 0.000000e+00 : f32
    %45 = vector.broadcast %cst_25 : f32 to vector<4x256xf32>
    %46 = arith.select %27, %24, %45 : vector<4x256xi1>, vector<4x256xf32>
    %47 = arith.addf %44, %46 : vector<4x256xf32>
    %c0_26 = arith.constant 0 : index
    %c1_27 = arith.constant 1 : index
    %c0_28 = arith.constant 0 : index
    %c0_29 = arith.constant 0 : index
    %48 = vector.load %arg6[%c0_26, %c1_27, %c0_28, %c0_29] : memref<1x5x4x256xf32, #tpu.memory_space<vmem>>, vector<1x1x4x256xf32>
    %49 = vector.shape_cast %48 : vector<1x1x4x256xf32> to vector<4x256xf32>
    %50 = vector.shape_cast %47 : vector<4x256xf32> to vector<1x1x4x256xf32>
    tpu.vector_store %arg6[%c0_26, %c1_27, %c0_28, %c0_29], %50 {strides = array<i32>} : memref<1x5x4x256xf32, #tpu.memory_space<vmem>>, vector<1x1x4x256xf32>,
    %c0_30 = arith.constant 0 : index
    %c2 = arith.constant 2 : index
    %c0_31 = arith.constant 0 : index
    %c0_32 = arith.constant 0 : index
    %51 = vector.load %arg6[%c0_30, %c2, %c0_31, %c0_32] : memref<1x5x4x256xf32, #tpu.memory_space<vmem>>, vector<1x1x4x256xf32>
    %52 = vector.shape_cast %51 : vector<1x1x4x256xf32> to vector<4x256xf32>
    %cst_33 = arith.constant 1.000000e+00 : f32
    %cst_34 = arith.constant 0.000000e+00 : f32
    %53 = vector.broadcast %cst_33 : f32 to vector<4x256xf32>
    %54 = vector.broadcast %cst_34 : f32 to vector<4x256xf32>
    %55 = arith.select %27, %53, %54 : vector<4x256xi1>, vector<4x256xf32>
    %56 = arith.addf %52, %55 : vector<4x256xf32>
    %c0_35 = arith.constant 0 : index
    %c2_36 = arith.constant 2 : index
    %c0_37 = arith.constant 0 : index
    %c0_38 = arith.constant 0 : index
    %57 = vector.load %arg6[%c0_35, %c2_36, %c0_37, %c0_38] : memref<1x5x4x256xf32, #tpu.memory_space<vmem>>, vector<1x1x4x256xf32>
    %58 = vector.shape_cast %57 : vector<1x1x4x256xf32> to vector<4x256xf32>
    %59 = vector.shape_cast %56 : vector<4x256xf32> to vector<1x1x4x256xf32>
    tpu.vector_store %arg6[%c0_35, %c2_36, %c0_37, %c0_38], %59 {strides = array<i32>} : memref<1x5x4x256xf32, #tpu.memory_space<vmem>>, vector<1x1x4x256xf32>,
    %c0_39 = arith.constant 0 : index
    %c3 = arith.constant 3 : index
    %c0_40 = arith.constant 0 : index
    %c0_41 = arith.constant 0 : index
    %60 = vector.load %arg6[%c0_39, %c3, %c0_40, %c0_41] : memref<1x5x4x256xf32, #tpu.memory_space<vmem>>, vector<1x1x4x256xf32>
    %61 = vector.shape_cast %60 : vector<1x1x4x256xf32> to vector<4x256xf32>
    %cst_42 = arith.constant 0.000000e+00 : f32
    %62 = vector.broadcast %cst_42 : f32 to vector<4x256xf32>
    %63 = arith.select %29, %24, %62 : vector<4x256xi1>, vector<4x256xf32>
    %64 = arith.addf %61, %63 : vector<4x256xf32>
    %c0_43 = arith.constant 0 : index
    %c3_44 = arith.constant 3 : index
    %c0_45 = arith.constant 0 : index
    %c0_46 = arith.constant 0 : index
    %65 = vector.load %arg6[%c0_43, %c3_44, %c0_45, %c0_46] : memref<1x5x4x256xf32, #tpu.memory_space<vmem>>, vector<1x1x4x256xf32>
    %66 = vector.shape_cast %65 : vector<1x1x4x256xf32> to vector<4x256xf32>
    %67 = vector.shape_cast %64 : vector<4x256xf32> to vector<1x1x4x256xf32>
    tpu.vector_store %arg6[%c0_43, %c3_44, %c0_45, %c0_46], %67 {strides = array<i32>} : memref<1x5x4x256xf32, #tpu.memory_space<vmem>>, vector<1x1x4x256xf32>,
    %c0_47 = arith.constant 0 : index
    %c4 = arith.constant 4 : index
    %c0_48 = arith.constant 0 : index
    %c0_49 = arith.constant 0 : index
    %68 = vector.load %arg6[%c0_47, %c4, %c0_48, %c0_49] : memref<1x5x4x256xf32, #tpu.memory_space<vmem>>, vector<1x1x4x256xf32>
    %69 = vector.shape_cast %68 : vector<1x1x4x256xf32> to vector<4x256xf32>
    %cst_50 = arith.constant 1.000000e+00 : f32
    %cst_51 = arith.constant 0.000000e+00 : f32
    %70 = vector.broadcast %cst_50 : f32 to vector<4x256xf32>
    %71 = vector.broadcast %cst_51 : f32 to vector<4x256xf32>
    %72 = arith.select %29, %70, %71 : vector<4x256xi1>, vector<4x256xf32>
    %73 = arith.addf %69, %72 : vector<4x256xf32>
    %c0_52 = arith.constant 0 : index
    %c4_53 = arith.constant 4 : index
    %c0_54 = arith.constant 0 : index
    %c0_55 = arith.constant 0 : index
    %74 = vector.load %arg6[%c0_52, %c4_53, %c0_54, %c0_55] : memref<1x5x4x256xf32, #tpu.memory_space<vmem>>, vector<1x1x4x256xf32>
    %75 = vector.shape_cast %74 : vector<1x1x4x256xf32> to vector<4x256xf32>
    %76 = vector.shape_cast %73 : vector<4x256xf32> to vector<1x1x4x256xf32>
    tpu.vector_store %arg6[%c0_52, %c4_53, %c0_54, %c0_55], %76 {strides = array<i32>} : memref<1x5x4x256xf32, #tpu.memory_space<vmem>>, vector<1x1x4x256xf32>,
    %c0_56 = arith.constant 0 : index
    %c0_57 = arith.constant 0 : index
    %c0_58 = arith.constant 0 : index
    %77 = vector.load %arg7[%c0_56, %c0_57, %c0_58] : memref<1x1x256xf32, #tpu.memory_space<vmem>>, vector<1x1x256xf32>
    %78 = vector.shape_cast %77 : vector<1x1x256xf32> to vector<1x256xf32>
    %79 = arith.addf %78, %36 : vector<1x256xf32>
    %c0_59 = arith.constant 0 : index
    %c0_60 = arith.constant 0 : index
    %c0_61 = arith.constant 0 : index
    %80 = vector.load %arg7[%c0_59, %c0_60, %c0_61] : memref<1x1x256xf32, #tpu.memory_space<vmem>>, vector<1x1x256xf32>
    %81 = vector.shape_cast %80 : vector<1x1x256xf32> to vector<1x256xf32>
    %82 = vector.shape_cast %79 : vector<1x256xf32> to vector<1x1x256xf32>
    tpu.vector_store %arg7[%c0_59, %c0_60, %c0_61], %82 {strides = array<i32>} : memref<1x1x256xf32, #tpu.memory_space<vmem>>, vector<1x1x256xf32>,
    return
  }
  func.func @transform_0(%arg0: i32, %arg1: i32, %arg2: i32) -> (i32, i32, i32) {
    %c1_i32 = arith.constant 1 : i32
    %0 = arith.muli %arg0, %c1_i32 : i32
    %1 = arith.addi %0, %arg2 : i32
    %c0_i32 = arith.constant 0 : i32
    %c0_i32_0 = arith.constant 0 : i32
    return %arg1, %c0_i32, %1 : i32, i32, i32
  }
  func.func @transform_1(%arg0: i32, %arg1: i32, %arg2: i32) -> (i32, i32, i32) {
    %c1_i32 = arith.constant 1 : i32
    %0 = arith.muli %arg0, %c1_i32 : i32
    %1 = arith.addi %0, %arg2 : i32
    %c0_i32 = arith.constant 0 : i32
    %c0_i32_0 = arith.constant 0 : i32
    return %arg1, %c0_i32, %1 : i32, i32, i32
  }
  func.func @transform_2(%arg0: i32, %arg1: i32, %arg2: i32) -> (i32, i32, i32) {
    %c1_i32 = arith.constant 1 : i32
    %0 = arith.muli %arg0, %c1_i32 : i32
    %1 = arith.addi %0, %arg2 : i32
    %c0_i32 = arith.constant 0 : i32
    %c0_i32_0 = arith.constant 0 : i32
    return %arg1, %c0_i32, %1 : i32, i32, i32
  }
  func.func @transform_3(%arg0: i32, %arg1: i32, %arg2: i32) -> (i32, i32, i32, i32) {
    %c0_i32 = arith.constant 0 : i32
    %c0_i32_0 = arith.constant 0 : i32
    %c0_i32_1 = arith.constant 0 : i32
    %c0_i32_2 = arith.constant 0 : i32
    return %arg0, %c0_i32, %c0_i32_0, %c0_i32_1 : i32, i32, i32, i32
  }
  func.func @transform_4(%arg0: i32, %arg1: i32, %arg2: i32) -> (i32, i32, i32) {
    %c0_i32 = arith.constant 0 : i32
    %c0_i32_0 = arith.constant 0 : i32
    %c0_i32_1 = arith.constant 0 : i32
    return %arg0, %c0_i32, %c0_i32_0 : i32, i32, i32
  }
}

</mosaic_0001>

<llo_original>
// kernel: dc_skelrec_and_ce_loss.1
$region0: #{dc_skelrec_and_ce_loss.1}
  #allocation0 [shape = 'u32[]', space=smem, size = 0x4, offset = 0x4, fixed_abs, tag = 'smem constant byte address 0x4 - core index']
  #allocation1 [shape = 'u32[72,128]{1,0:T(1,128)}', space=vmem, size = 0x9000, scoped, tag = 'internal scratch']
  %s0 = inlined_call_operand.vmem [shape: f32[2,4,256], index: 0, kind: input, shape index: {}]
  %s1 = inlined_call_operand.vmem [shape: s32[2,1,256], index: 1, kind: input, shape index: {}]
  %s2 = inlined_call_operand.vmem [shape: s32[2,1,256], index: 2, kind: input, shape index: {}]
  %s3 = inlined_call_operand.vmem [shape: f32[1,5,4,256], index: 3, kind: output, shape index: {0}]
  %s4 = inlined_call_operand.vmem [shape: f32[1,1,256], index: 4, kind: output, shape index: {1}]
  %5 = xla_tuple %s3, %s4
  %s6 = sld [smem:[#allocation0]]
  $region57: #{dc_skelrec_and_ce_loss.1} parent=0
    _
  %s8 = ssub.s32 1, %s6
  %s9 = scalar_select 0, %s8, %s6
  loop: start=0, step=1, limit=4
  $region2: #{dc_skelrec_and_ce_loss.1} parent=0 // loop_pre_header
    _
  $region3: #{dc_skelrec_and_ce_loss.1} parent=0 // loop_header
    %s11 = sphi 0, %s15
    %p12 = scmp.ge.s32.totalorder %s11, 4
    %s18 = sphi 0, %s37
    %s19 = sphi 0, %s33
    %s20 = sphi 0, %s29
    %s21 = sphi 0, %s18
    %s22 = sphi 0, %s19
    %s23 = sphi 0, %s20
    %s24 = sphi 0, %s21
    %s25 = sphi 0, %s22
    %s26 = sphi 0, %s23
    %s44 = sphi 0, %s46
    %s47 = sphi 0, %s44
    %s48 = sphi 0, %s47
    %s64 = sphi 0, %s48
    %s74 = sphi 0, %s76
    %s77 = sphi 0, %s74
    %s78 = sphi 0, %s77
    %s94 = sphi 0, %s78
    %s104 = sphi 0, %s106
    %s107 = sphi 0, %s104
    %s108 = sphi 0, %s107
    %s124 = sphi 0, %s108
    %s130 = sphi 0, %s132
    %s133 = sphi 0, %s130
    %s134 = sphi 0, %s133
    %s150 = sphi 0, %s134
    %s156 = sphi 0, %s158
    %s159 = sphi 0, %s156
    %s160 = sphi 0, %s159
    %s176 = sphi 0, %s160
  $region4: #{dc_skelrec_and_ce_loss.1} parent=0 // loop_header_branch
    %14 = sbr.rel (%p12) target = $region8
  $region5: #{dc_skelrec_and_ce_loss.1} parent=0 // loop_body
    %s16 = ssub.s32 %s11, 1
    %s17 = ssub.s32 %s11, 2
    %s27 = sadd.s32 1, %s20
    %p28 = scmp.ge.s32.totalorder %s27, 1
    %s29 = scalar_select %p28, 0, %s27
    %s30 = sadd.s32 1, %s19
    %s31 = scalar_select %p28, %s30, %s19
    %p32 = scmp.ge.s32.totalorder %s31, 2
    %s33 = scalar_select %p32, 0, %s31
    %s34 = sadd.s32 1, %s18
    %s35 = scalar_select %p32, %s34, %s18
    %p36 = scmp.ge.s32.totalorder %s35, 1
    %s37 = scalar_select %p36, 0, %s35
    %s38 = sadd.s32 %s18, %s20
    %s39 = sadd.s32 %s37, %s29
    %s40 = ssub.s32 %s19, %s33
    %s41 = ssub.s32 %s38, %s39
    %s42 = sor.u32 %s40, %s41
    %p43 = scmp.eq.s32.totalorder %s42, 0
    %s45 = sadd.s32 %s44, 1
    %s46 = scalar_select %p43, %s44, %s45
    %p49 = pneg %p43
    %p50 = scmp.eq.s32.totalorder %s11, 1
    %p51 = por %p49, %p50
    %p52 = scmp.ne.s32.totalorder %s44, %s47
    %p53 = scmp.eq.s32.totalorder %s11, 0
    %p54 = por %p52, %p53
    %p55 = scmp.ne.s32.totalorder %s44, %s47
    %p56 = scmp.eq.s32.totalorder %s16, 1
    %p57 = por %p55, %p56
    %p58 = scmp.ne.s32.totalorder %s47, %s48
    %p59 = scmp.eq.s32.totalorder %s16, 0
    %p60 = por %p58, %p59
    %p61 = scmp.ne.s32.totalorder %s47, %s48
    %p62 = scmp.eq.s32.totalorder %s17, 1
    %p63 = por %p61, %p62
    %p65 = scmp.ne.s32.totalorder %s48, %s64
    %p66 = scmp.eq.s32.totalorder %s17, 0
    %p67 = por %p65, %p66
    %s68 = sadd.s32 %s18, %s20
    %s69 = sadd.s32 %s37, %s29
    %s70 = ssub.s32 %s19, %s33
    %s71 = ssub.s32 %s68, %s69
    %s72 = sor.u32 %s70, %s71
    %p73 = scmp.eq.s32.totalorder %s72, 0
    %s75 = sadd.s32 %s74, 1
    %s76 = scalar_select %p73, %s74, %s75
    %p79 = pneg %p73
    %p80 = scmp.eq.s32.totalorder %s11, 1
    %p81 = por %p79, %p80
    %p82 = scmp.ne.s32.totalorder %s74, %s77
    %p83 = scmp.eq.s32.totalorder %s11, 0
    %p84 = por %p82, %p83
    %p85 = scmp.ne.s32.totalorder %s74, %s77
    %p86 = scmp.eq.s32.totalorder %s16, 1
    %p87 = por %p85, %p86
    %p88 = scmp.ne.s32.totalorder %s77, %s78
    %p89 = scmp.eq.s32.totalorder %s16, 0
    %p90 = por %p88, %p89
    %p91 = scmp.ne.s32.totalorder %s77, %s78
    %p92 = scmp.eq.s32.totalorder %s17, 1
    %p93 = por %p91, %p92
    %p95 = scmp.ne.s32.totalorder %s78, %s94
    %p96 = scmp.eq.s32.totalorder %s17, 0
    %p97 = por %p95, %p96
    %s98 = sadd.s32 %s18, %s20
    %s99 = sadd.s32 %s37, %s29
    %s100 = ssub.s32 %s19, %s33
    %s101 = ssub.s32 %s98, %s99
    %s102 = sor.u32 %s100, %s101
    %p103 = scmp.eq.s32.totalorder %s102, 0
    %s105 = sadd.s32 %s104, 1
    %s106 = scalar_select %p103, %s104, %s105
    %p109 = pneg %p103
    %p110 = scmp.eq.s32.totalorder %s11, 1
    %p111 = por %p109, %p110
    %p112 = scmp.ne.s32.totalorder %s104, %s107
    %p113 = scmp.eq.s32.totalorder %s11, 0
    %p114 = por %p112, %p113
    %p115 = scmp.ne.s32.totalorder %s104, %s107
    %p116 = scmp.eq.s32.totalorder %s16, 1
    %p117 = por %p115, %p116
    %p118 = scmp.ne.s32.totalorder %s107, %s108
    %p119 = scmp.eq.s32.totalorder %s16, 0
    %p120 = por %p118, %p119
    %p121 = scmp.ne.s32.totalorder %s107, %s108
    %p122 = scmp.eq.s32.totalorder %s17, 1
    %p123 = por %p121, %p122
    %p125 = scmp.ne.s32.totalorder %s108, %s124
    %p126 = scmp.eq.s32.totalorder %s17, 0
    %p127 = por %p125, %p126
    %s128 = ssub.s32 %s18, %s37
    %p129 = scmp.eq.s32.totalorder %s128, 0
    %s131 = sadd.s32 %s130, 1
    %s132 = scalar_select %p129, %s130, %s131
    %p135 = pneg %p129
    %p136 = scmp.eq.s32.totalorder %s11, 1
    %p137 = por %p135, %p136
    %p138 = scmp.ne.s32.totalorder %s130, %s133
    %p139 = scmp.eq.s32.totalorder %s11, 0
    %p140 = por %p138, %p139
    %p141 = scmp.ne.s32.totalorder %s130, %s133
    %p142 = scmp.eq.s32.totalorder %s16, 1
    %p143 = por %p141, %p142
    %p144 = scmp.ne.s32.totalorder %s133, %s134
    %p145 = scmp.eq.s32.totalorder %s16, 0
    %p146 = por %p144, %p145
    %p147 = scmp.ne.s32.totalorder %s133, %s134
    %p148 = scmp.eq.s32.totalorder %s17, 1
    %p149 = por %p147, %p148
    %p151 = scmp.ne.s32.totalorder %s134, %s150
    %p152 = scmp.eq.s32.totalorder %s17, 0
    %p153 = por %p151, %p152
    %s154 = ssub.s32 %s18, %s37
    %p155 = scmp.eq.s32.totalorder %s154, 0
    %s157 = sadd.s32 %s156, 1
    %s158 = scalar_select %p155, %s156, %s157
    %p161 = pneg %p155
    %p162 = scmp.eq.s32.totalorder %s11, 1
    %p163 = por %p161, %p162
    %p164 = scmp.ne.s32.totalorder %s156, %s159
    %p165 = scmp.eq.s32.totalorder %s11, 0
    %p166 = por %p164, %p165
    %p167 = scmp.ne.s32.totalorder %s156, %s159
    %p168 = scmp.eq.s32.totalorder %s16, 1
    %p169 = por %p167, %p168
    %p170 = scmp.ne.s32.totalorder %s159, %s160
    %p171 = scmp.eq.s32.totalorder %s16, 0
    %p172 = por %p170, %p171
    %p173 = scmp.ne.s32.totalorder %s159, %s160
    %p174 = scmp.eq.s32.totalorder %s17, 1
    %p175 = por %p173, %p174
    %p177 = scmp.ne.s32.totalorder %s160, %s176
    %p178 = scmp.eq.s32.totalorder %s17, 0
    %p179 = por %p177, %p178
    %p180 = scmp.le.s32.totalorder 1, %s11
    %p181 = scmp.lt.s32.totalorder %s11, 3
    %p182 = pnand %p180, %p181
    %p183 = pneg %p182
    // Predicated region
    $region9: #{dc_skelrec_and_ce_loss.1} parent=5 // pred_check
      _
    $region10: #{dc_skelrec_and_ce_loss.1} parent=5 // pred_check_branch
      %185 = sbr.rel (%p182) target = $region12
    $region11: #{dc_skelrec_and_ce_loss.1} parent=5 // pred_region
      %s186 = ssub.s32 %s11, 1
    $region12: #{dc_skelrec_and_ce_loss.1} parent=5 // pred_fallthru
      _
    %p187 = scmp.lt.s32.totalorder %s11, 2
    // Predicated region
    $region13: #{dc_skelrec_and_ce_loss.1} parent=5 // pred_check
      %p188 = pneg %p187
    $region14: #{dc_skelrec_and_ce_loss.1} parent=5 // pred_check_branch
      %190 = sbr.rel (%p188) target = $region16
    $region15: #{dc_skelrec_and_ce_loss.1} parent=5 // pred_region
      // Predicated region
      $region17: #{dc_skelrec_and_ce_loss.1} parent=15 // pred_check
        %p191 = pneg %p54
      $region18: #{dc_skelrec_and_ce_loss.1} parent=15 // pred_check_branch
        %193 = sbr.rel (%p191) target = $region20
      $region19: #{dc_skelrec_and_ce_loss.1} parent=15 // pred_region
        %s194 = sadd.s32 %s18, %s20
        %s195 = smul.u32 2, %s194
        %p196 = scmp.lt.s32.totalorder %s19, 1
        %s197 = scalar_select %p196, %s19, 1
        %p198 = scmp.lt.s32.totalorder %s195, 1
        %s199 = scalar_select %p198, %s195, 1
        %s200 = smul.addr %s197, 2
        %s201 = sadd.s32 %s199, %s200
        %s202 = smul.addr %s201, 4
        %s203 = scalar_lea.vmem %s0, %s202
        %s204 = sadd.s32 %s18, %s20
        %s205 = smul.u32 2, %s204
      $region20: #{dc_skelrec_and_ce_loss.1} parent=15 // pred_fallthru
        _
      // Predicated region
      $region21: #{dc_skelrec_and_ce_loss.1} parent=15 // pred_check
        %p206 = pneg %p84
      $region22: #{dc_skelrec_and_ce_loss.1} parent=15 // pred_check_branch
        %208 = sbr.rel (%p206) target = $region24
      $region23: #{dc_skelrec_and_ce_loss.1} parent=15 // pred_region
        %s209 = sadd.s32 %s18, %s20
        %s210 = smul.u32 2, %s209
        %p211 = scmp.lt.s32.totalorder %s19, 1
        %s212 = scalar_select %p211, %s19, 1
        %p213 = scmp.lt.s32.totalorder %s210, 1
        %s214 = scalar_select %p213, %s210, 1
        %s215 = smul.addr %s212, 2
        %s216 = sadd.s32 %s214, %s215
        %s217 = scalar_lea.vmem %s1, %s216
        %s218 = sadd.s32 %s18, %s20
        %s219 = smul.u32 2, %s218
      $region24: #{dc_skelrec_and_ce_loss.1} parent=15 // pred_fallthru
        _
      // Predicated region
      $region25: #{dc_skelrec_and_ce_loss.1} parent=15 // pred_check
        %p220 = pneg %p114
      $region26: #{dc_skelrec_and_ce_loss.1} parent=15 // pred_check_branch
        %222 = sbr.rel (%p220) target = $region28
      $region27: #{dc_skelrec_and_ce_loss.1} parent=15 // pred_region
        %s223 = sadd.s32 %s18, %s20
        %s224 = smul.u32 2, %s223
        %p225 = scmp.lt.s32.totalorder %s19, 1
        %s226 = scalar_select %p225, %s19, 1
        %p227 = scmp.lt.s32.totalorder %s224, 1
        %s228 = scalar_select %p227, %s224, 1
        %s229 = smul.addr %s226, 2
        %s230 = sadd.s32 %s228, %s229
        %s231 = scalar_lea.vmem %s2, %s230
        %s232 = sadd.s32 %s18, %s20
        %s233 = smul.u32 2, %s232
      $region28: #{dc_skelrec_and_ce_loss.1} parent=15 // pred_fallthru
        _
    $region16: #{dc_skelrec_and_ce_loss.1} parent=5 // pred_fallthru
      _
    %p234 = scmp.le.s32.totalorder 1, %s11
    %p235 = scmp.lt.s32.totalorder %s11, 3
    %p236 = pnand %p234, %p235
    %p237 = pneg %p236
    // Predicated region
    $region29: #{dc_skelrec_and_ce_loss.1} parent=5 // pred_check
      _
    $region30: #{dc_skelrec_and_ce_loss.1} parent=5 // pred_check_branch
      %239 = sbr.rel (%p236) target = $region32
    $region31: #{dc_skelrec_and_ce_loss.1} parent=5 // pred_region
      %s240 = ssub.s32 %s11, 1
      %s241 = sadd.s32 %s21, %s23
      %s242 = smul.u32 2, %s241
      %p243 = scmp.lt.s32.totalorder %s22, 1
      %s244 = scalar_select %p243, %s22, 1
      %p245 = scmp.lt.s32.totalorder %s242, 1
      %s246 = scalar_select %p245, %s242, 1
      %s247 = smul.addr %s244, 2
      %s248 = sadd.s32 %s246, %s247
      %s249 = smul.addr %s248, 4
      %s250 = scalar_lea.vmem %s0, %s249
      %p251 = pneg %p60
      %p252 = pneg %p57
      %s253 = sadd.s32 %s21, %s23
      %s254 = smul.u32 2, %s253
      %p255 = scmp.lt.s32.totalorder %s22, 1
      %s256 = scalar_select %p255, %s22, 1
      %p257 = scmp.lt.s32.totalorder %s254, 1
      %s258 = scalar_select %p257, %s254, 1
      %s259 = smul.addr %s256, 2
      %s260 = sadd.s32 %s258, %s259
      %s261 = scalar_lea.vmem %s1, %s260
      %p262 = pneg %p90
      %p263 = pneg %p87
      %s264 = sadd.s32 %s21, %s23
      %s265 = smul.u32 2, %s264
      %p266 = scmp.lt.s32.totalorder %s22, 1
      %s267 = scalar_select %p266, %s22, 1
      %p268 = scmp.lt.s32.totalorder %s265, 1
      %s269 = scalar_select %p268, %s265, 1
      %s270 = smul.addr %s267, 2
      %s271 = sadd.s32 %s269, %s270
      %s272 = scalar_lea.vmem %s2, %s271
      %p273 = pneg %p120
      %p274 = pneg %p117
      %p275 = pneg %p146
      %p276 = pneg %p143
      %p277 = scmp.lt.s32.totalorder %s21, 0
      %s278 = scalar_select %p277, %s21, 0
      %s279 = smul.addr %s278, 10
      %s280 = smul.addr %s279, 4
      %s281 = scalar_lea.vmem %s3, %s280
      %p282 = pneg %p172
      %p283 = pneg %p169
      %p284 = scmp.lt.s32.totalorder %s21, 0
      %s285 = scalar_select %p284, %s21, 0
      %s286 = smul.addr %s285, 2
      %s287 = scalar_lea.vmem %s4, %s286
      %s288 = sadd.s32 %s21, %s23
      %s289 = smul.u32 2, %s288
      %p290 = scmp.lt.s32.totalorder %s22, 1
      %s291 = scalar_select %p290, %s22, 1
      %p292 = scmp.lt.s32.totalorder %s289, 1
      %s293 = scalar_select %p292, %s289, 1
      %s294 = smul.addr %s291, 2
      %s295 = sadd.s32 %s293, %s294
      %s296 = smul.addr %s295, 4
      %s297 = scalar_lea.vmem %s0, %s296
      %s298 = sadd.s32 %s21, %s23
      %s299 = smul.u32 2, %s298
      %s300 = sadd.s32 %s21, %s23
      %s301 = smul.u32 2, %s300
      %p302 = scmp.lt.s32.totalorder %s22, 1
      %s303 = scalar_select %p302, %s22, 1
      %p304 = scmp.lt.s32.totalorder %s301, 1
      %s305 = scalar_select %p304, %s301, 1
      %s306 = smul.addr %s303, 2
      %s307 = sadd.s32 %s305, %s306
      %s308 = scalar_lea.vmem %s1, %s307
      %s309 = sadd.s32 %s21, %s23
      %s310 = smul.u32 2, %s309
      %s311 = sadd.s32 %s21, %s23
      %s312 = smul.u32 2, %s311
      %p313 = scmp.lt.s32.totalorder %s22, 1
      %s314 = scalar_select %p313, %s22, 1
      %p315 = scmp.lt.s32.totalorder %s312, 1
      %s316 = scalar_select %p315, %s312, 1
      %s317 = smul.addr %s314, 2
      %s318 = sadd.s32 %s316, %s317
      %s319 = scalar_lea.vmem %s2, %s318
      %s320 = sadd.s32 %s21, %s23
      %s321 = smul.u32 2, %s320
      %p322 = scmp.lt.s32.totalorder %s21, 0
      %s323 = scalar_select %p322, %s21, 0
      %s324 = smul.addr %s323, 10
      %s325 = smul.addr %s324, 4
      %s326 = scalar_lea.vmem %s3, %s325
      %p327 = scmp.lt.s32.totalorder %s21, 0
      %s328 = scalar_select %p327, %s21, 0
      %s329 = smul.addr %s328, 2
      %s330 = scalar_lea.vmem %s4, %s329
      %p331 = scmp.eq.s32.totalorder %s22, 0
      %p332 = scmp.eq.s32.totalorder %s23, 0
      %p333 = pnand %p331, %p332
      %p334 = pneg %p333
      // Predicated region
      $region33: #{dc_skelrec_and_ce_loss.1} parent=31 // pred_check
        _
      $region34: #{dc_skelrec_and_ce_loss.1} parent=31 // pred_check_branch
        %336 = sbr.rel (%p333) target = $region36
      $region35: #{dc_skelrec_and_ce_loss.1} parent=31 // pred_region
        %337 = vst [vmem:[%s326] sm:$0xff] 0.0
        %338 = vst [vmem:[%s326 + $0x8] sm:$0xff] 0.0
        %339 = vst [vmem:[%s326 + $0x10] sm:$0xff] 0.0
        %340 = vst [vmem:[%s326 + $0x18] sm:$0xff] 0.0
        %341 = vst [vmem:[%s326 + $0x20] sm:$0xff] 0.0
        %v342 = vlaneseq
        %vm343 = vcmp.ge.s32.totalorder %v342, 0
        %vm344 = vcmp.lt.s32.totalorder %v342, 256
        %vm345 = vmand %vm343, %vm344
        %346 = vst.msk [vmem:[%s330] sm:$0x3] %vm345, 0.0
      $region36: #{dc_skelrec_and_ce_loss.1} parent=31 // pred_fallthru
        _
      %v347 = vld [vmem:[%s297] sm:$0xff]
      %v348 = vld [vmem:[%s308] sm:$0x3]
      %v349 = vld [vmem:[%s319] sm:$0x3]
      %351 = vst [vmem:[#allocation1] ss:$2 sm:$0xff] %v347
      %v352 = vld.sshfl [vmem:[#allocation1] sm:$0xff pattern:$0x75316420]
      %v353 = vld.sshfl [vmem:[#allocation1 + $0x8] sm:$0xff pattern:$0x75316420]
      %vm356 = vcmask 1043456
      %v357 = vsel %vm356, %v352, -inf
      %v358 = vrot.slane %v357, 4
      %v359 = vmax.f32 %v357, %v358
      %v360 = vrot.slane %v359, 2
      %v361 = vmax.f32 %v359, %v360
      %v362 = vrot.slane %v361, 1
      %v363 = vmax.f32 %v361, %v362
      %v364 = vsel %vm356, %v353, -inf
      %v365 = vrot.slane %v364, 4
      %v366 = vmax.f32 %v364, %v365
      %v367 = vrot.slane %v366, 2
      %v368 = vmax.f32 %v366, %v367
      %v369 = vrot.slane %v368, 1
      %v370 = vmax.f32 %v368, %v369
      %v373 = vrot.slane %v370, 4
      %v374 = vsel %vm356, %v363, %v373
      %v376 = vsub.f32 %v347, %v374
      %v377 = vmul.f32 %v376, 1.442695
      %v378 = vpow.pop %v377
      %380 = vst [vmem:[#allocation1] ss:$2 sm:$0xff] %v378
      %v381 = vld.sshfl [vmem:[#allocation1] sm:$0xff pattern:$0x75316420]
      %v382 = vld.sshfl [vmem:[#allocation1 + $0x8] sm:$0xff pattern:$0x75316420]
      %v385 = vsel %vm356, %v381, 0.0
      %v386 = vrot.slane %v385, 4
      %v387 = vadd.f32 %v385, %v386
      %v388 = vrot.slane %v387, 2
      %v389 = vadd.f32 %v387, %v388
      %v390 = vrot.slane %v389, 1
      %v391 = vadd.f32 %v389, %v390
      %v392 = vsel %vm356, %v382, 0.0
      %v393 = vrot.slane %v392, 4
      %v394 = vadd.f32 %v392, %v393
      %v395 = vrot.slane %v394, 2
      %v396 = vadd.f32 %v394, %v395
      %v397 = vrot.slane %v396, 1
      %v398 = vadd.f32 %v396, %v397
      %v399 = vrcp.pop %v391
      %v400 = vrcp.pop %v398
      %v401 = vmul.f32 %v391, %v399
      %v402 = vmul.f32 %v398, %v400
      %v403 = vsub.f32 2.0, %v401
      %v404 = vsub.f32 2.0, %v402
      %v405 = vmul.f32 %v399, %v403
      %v406 = vmul.f32 %v400, %v404
      %v409 = vrot.slane %v406, 4
      %v410 = vsel %vm356, %v405, %v409
      %v412 = vmul.f32 %v378, %v410
      %v413 = vlaneseq
      %v414 = vshrl.u32 %v413, 7
      %v415 = vperm.slane %v348, 0
      %v416 = vperm.slane %v348, 1
      %vm417 = vcmp.eq.s32.totalorder %v414, %v415
      %vm418 = vcmp.eq.s32.totalorder %v414, %v416
      %v419 = vperm.slane %v349, 0
      %v420 = vperm.slane %v349, 1
      %vm421 = vcmp.eq.s32.totalorder %v414, %v419
      %vm422 = vcmp.eq.s32.totalorder %v414, %v420
      %423 = vst [vmem:[#allocation1] ss:$2 sm:$0xff] %v347
      %v424 = vld.sshfl [vmem:[#allocation1] sm:$0xff pattern:$0x75316420]
      %v425 = vld.sshfl [vmem:[#allocation1 + $0x8] sm:$0xff pattern:$0x75316420]
      %v428 = vsel %vm417, %v424, 0.0
      %v429 = vsel %vm418, %v425, 0.0
      %v430 = vsel %vm356, %v428, 0.0
      %v431 = vrot.slane %v430, 4
      %v432 = vadd.f32 %v430, %v431
      %v433 = vrot.slane %v432, 2
      %v434 = vadd.f32 %v432, %v433
      %v435 = vrot.slane %v434, 1
      %v436 = vadd.f32 %v434, %v435
      %v437 = vsel %vm356, %v429, 0.0
      %v438 = vrot.slane %v437, 4
      %v439 = vadd.f32 %v437, %v438
      %v440 = vrot.slane %v439, 2
      %v441 = vadd.f32 %v439, %v440
      %v442 = vrot.slane %v441, 1
      %v443 = vadd.f32 %v441, %v442
      %v444 = vlog2.pop %v391
      %v445 = vmul.f32 %v444, 0.6931472
      %v446 = vlog2.pop %v398
      %v447 = vmul.f32 %v446, 0.6931472
      %v448 = vadd.f32 %v363, %v445
      %v449 = vadd.f32 %v370, %v447
      %v450 = vsub.f32 %v448, %v436
      %v451 = vsub.f32 %v449, %v443
      %v452 = vld [vmem:[%s326] sm:$0xff]
      %v453 = vadd.f32 %v452, %v412
      %454 = vst [vmem:[%s326] sm:$0xff] %v453
      %s455 = scalar_lea.vmem %s326, 8
      %v456 = vld [vmem:[%s455] sm:$0xff]
      %458 = vst [vmem:[#allocation1] ss:$2 sm:$0xff] %v412
      %v459 = vld.sshfl [vmem:[#allocation1] sm:$0xff pattern:$0x75316420]
      %v460 = vld.sshfl [vmem:[#allocation1 + $0x8] sm:$0xff pattern:$0x75316420]
      %v463 = vsel %vm417, %v459, 0.0
      %v464 = vsel %vm418, %v460, 0.0
      %v467 = vrot.slane %v464, 4
      %v468 = vsel %vm356, %v463, %v467
      %v470 = vadd.f32 %v456, %v468
      %471 = vst [vmem:[%s455] sm:$0xff] %v470
      %s472 = scalar_lea.vmem %s326, 16
      %v473 = vld [vmem:[%s472] sm:$0xff]
      %v474 = vsel %vm417, 1.0, 0.0
      %v475 = vsel %vm418, 1.0, 0.0
      %v478 = vrot.slane %v475, 4
      %v479 = vsel %vm356, %v474, %v478
      %v481 = vadd.f32 %v473, %v479
      %482 = vst [vmem:[%s472] sm:$0xff] %v481
      %s483 = scalar_lea.vmem %s326, 24
      %v484 = vld [vmem:[%s483] sm:$0xff]
      %485 = vst [vmem:[#allocation1] ss:$2 sm:$0xff] %v412
      %v486 = vld.sshfl [vmem:[#allocation1] sm:$0xff pattern:$0x75316420]
      %v487 = vld.sshfl [vmem:[#allocation1 + $0x8] sm:$0xff pattern:$0x75316420]
      %v490 = vsel %vm421, %v486, 0.0
      %v491 = vsel %vm422, %v487, 0.0
      %v494 = vrot.slane %v491, 4
      %v495 = vsel %vm356, %v490, %v494
      %v497 = vadd.f32 %v484, %v495
      %498 = vst [vmem:[%s483] sm:$0xff] %v497
      %s499 = scalar_lea.vmem %s326, 32
      %v500 = vld [vmem:[%s499] sm:$0xff]
      %v501 = vsel %vm421, 1.0, 0.0
      %v502 = vsel %vm422, 1.0, 0.0
      %v505 = vrot.slane %v502, 4
      %v506 = vsel %vm356, %v501, %v505
      %v508 = vadd.f32 %v500, %v506
      %509 = vst [vmem:[%s499] sm:$0xff] %v508
      %v510 = vld [vmem:[%s330] sm:$0x3]
      %v513 = vrot.slane %v451, 7
      %vm514 = vcmask 1040384
      %v515 = vsel %vm514, %v450, %v513
      %v517 = vadd.f32 %v510, %v515
      %v518 = vlaneseq
      %vm519 = vcmp.ge.s32.totalorder %v518, 0
      %vm520 = vcmp.lt.s32.totalorder %v518, 256
      %vm521 = vmand %vm519, %vm520
      %522 = vst.msk [vmem:[%s330] sm:$0x3] %vm521, %v517
      %p523 = scmp.lt.s32.totalorder %s21, 0
      %s524 = scalar_select %p523, %s21, 0
      %s525 = smul.addr %s524, 10
      %s526 = smul.addr %s525, 4
      %s527 = scalar_lea.vmem %s3, %s526
      %p528 = scmp.lt.s32.totalorder %s21, 0
      %s529 = scalar_select %p528, %s21, 0
      %s530 = smul.addr %s529, 2
      %s531 = scalar_lea.vmem %s4, %s530
      // Predicated region
      $region37: #{dc_skelrec_and_ce_loss.1} parent=31 // pred_check
        %p532 = pneg %p143
      $region38: #{dc_skelrec_and_ce_loss.1} parent=31 // pred_check_branch
        %534 = sbr.rel (%p532) target = $region40
      $region39: #{dc_skelrec_and_ce_loss.1} parent=31 // pred_region
        _
      $region40: #{dc_skelrec_and_ce_loss.1} parent=31 // pred_fallthru
        _
      // Predicated region
      $region41: #{dc_skelrec_and_ce_loss.1} parent=31 // pred_check
        %p535 = pneg %p169
      $region42: #{dc_skelrec_and_ce_loss.1} parent=31 // pred_check_branch
        %537 = sbr.rel (%p535) target = $region44
      $region43: #{dc_skelrec_and_ce_loss.1} parent=31 // pred_region
        _
      $region44: #{dc_skelrec_and_ce_loss.1} parent=31 // pred_fallthru
        _
      // Predicated region
      $region45: #{dc_skelrec_and_ce_loss.1} parent=31 // pred_check
        %p538 = pneg %p143
      $region46: #{dc_skelrec_and_ce_loss.1} parent=31 // pred_check_branch
        %540 = sbr.rel (%p538) target = $region48
      $region47: #{dc_skelrec_and_ce_loss.1} parent=31 // pred_region
        %p541 = scmp.lt.s32.totalorder %s21, 0
        %s542 = scalar_select %p541, %s21, 0
        %s543 = smul.addr %s542, 10
        %s544 = smul.addr %s543, 4
        %s545 = scalar_lea.vmem %s3, %s544
      $region48: #{dc_skelrec_and_ce_loss.1} parent=31 // pred_fallthru
        _
      // Predicated region
      $region49: #{dc_skelrec_and_ce_loss.1} parent=31 // pred_check
        %p546 = pneg %p169
      $region50: #{dc_skelrec_and_ce_loss.1} parent=31 // pred_check_branch
        %548 = sbr.rel (%p546) target = $region52
      $region51: #{dc_skelrec_and_ce_loss.1} parent=31 // pred_region
        %p549 = scmp.lt.s32.totalorder %s21, 0
        %s550 = scalar_select %p549, %s21, 0
        %s551 = smul.addr %s550, 2
        %s552 = scalar_lea.vmem %s4, %s551
      $region52: #{dc_skelrec_and_ce_loss.1} parent=31 // pred_fallthru
        _
    $region32: #{dc_skelrec_and_ce_loss.1} parent=5 // pred_fallthru
      _
    %p553 = scmp.le.s32.totalorder 2, %s11
    // Predicated region
    $region53: #{dc_skelrec_and_ce_loss.1} parent=5 // pred_check
      %p554 = pneg %p553
    $region54: #{dc_skelrec_and_ce_loss.1} parent=5 // pred_check_branch
      %556 = sbr.rel (%p554) target = $region56
    $region55: #{dc_skelrec_and_ce_loss.1} parent=5 // pred_region
      %s557 = ssub.s32 %s11, 2
    $region56: #{dc_skelrec_and_ce_loss.1} parent=5 // pred_fallthru
      _
  $region6: #{dc_skelrec_and_ce_loss.1} parent=0 // loop_footer
    %s15 = sadd.s32 1, %s11
  $region7: #{dc_skelrec_and_ce_loss.1} parent=0 // loop_footer_branch
    %10 = sbr.rel target = $region3
  $region8: #{dc_skelrec_and_ce_loss.1} parent=0 // loop_exit
    _

</llo_original>
